<compile_context>
chip_gen: v6e
topology: v6e:2x2x1
jax: 0.10.0
libtpu: 0.0.40
codegen_flags: <defaults>
</compile_context>

<pallas_src>
import functools

import jax
import jax.numpy as jnp
from jax.experimental import pallas as pl
from jax.experimental.pallas import tpu as pltpu

_LANE = 128


def _round_up(x, m):
    return ((x + m - 1) // m) * m


def _fused_fourier_kan_kernel(x_ref, *refs, num_layers, grid_size):
    """refs = (w_0, b_0, w_1, b_1, ..., w_{L-1}, b_{L-1}, o_ref)."""
    o_ref = refs[-1]
    wb = refs[:-1]
    G = grid_size

    h = x_ref[...].astype(jnp.float32)                 # (TB, I0)
    for layer in range(num_layers):
        w_ref = wb[2 * layer]                          # (2*G*I, O) bf16, matmul-ready
        b_ref = wb[2 * layer + 1]                      # (1, O) f32

        # One cos + one sin per activation element on the EUP; harmonics
        # g = 2..G via the VPU angle-addition recurrence (cheap VALU work).
        c1 = jnp.cos(h)
        s1 = jnp.sin(h)
        cos_blocks = [c1]
        sin_blocks = [s1]
        for _ in range(1, G):
            c_prev, s_prev = cos_blocks[-1], sin_blocks[-1]
            cos_blocks.append(c_prev * c1 - s_prev * s1)   # cos((g-1)x + x)
            sin_blocks.append(s_prev * c1 + c_prev * s1)   # sin((g-1)x + x)

        # Lane-stack ONCE: [cos(1x)..cos(Gx) | sin(1x)..sin(Gx)], i minor inside
        # each block, matching the (2, G, I, O) -> (2*G*I, O) weight layout.
        basis = jnp.concatenate(cos_blocks + sin_blocks, axis=1)  # (TB, 2*G*I)

        h = jnp.dot(basis.astype(w_ref.dtype), w_ref[...],
                    preferred_element_type=jnp.float32) + b_ref[...]

    o_ref[...] = h.astype(o_ref.dtype)


def _pick_batch_tile(batch):
    # Multiple of 8 sublanes; prefer an even number of grid steps >= 2 so both
    # v7x TensorCores get balanced work under the "parallel" grid axis.
    candidates = (512, 256, 128, 64, 32, 16, 8)
    for tb in candidates:
        if batch % tb == 0 and (batch // tb) >= 2 and (batch // tb) % 2 == 0:
            return tb
    for tb in candidates:
        if batch % tb == 0 and (batch // tb) >= 2:
            return tb
    return batch  # small batch: single tile (block == full dim is always legal)


def _vmem_budget_bytes():
    try:
        phys = pltpu.get_tpu_info().vmem_capacity_bytes
    except Exception:
        phys = 64 * 1024 * 1024        # v7x has the smallest per-TC VMEM
    return phys - 8 * 1024 * 1024      # headroom for compiler internal scratch


def _vmem_estimate_bytes(run_params, tb, f_in0):
    # Weights/bias counted twice (pipeline double-buffering, conservative) plus
    # the compiler-managed intermediates: double-buffered in/out tiles, the f32
    # trig blocks + f32/bf16 basis, and the f32 accumulator.
    w_bytes = sum(w.size * w.dtype.itemsize + b.size * b.dtype.itemsize
                  for w, b in run_params)
    max_k = max(w.shape[0] for w, _ in run_params)
    max_o = max(w.shape[1] for w, _ in run_params)
    act = (2 * tb * f_in0 * 4 + 2 * tb * max_o * 4      # in/out tiles (x2 buffers)
           + 2 * tb * max_k * 4                          # trig blocks + f32 basis spill
           + tb * max_k * 2                              # bf16 basis at MXU boundary
           + tb * max_o * 4)                             # f32 accumulator
    return 2 * w_bytes + act


def init_fourier_kan_params(key, layers_hidden, grid_size, *, add_bias=True,
                            smooth_initialization=False):
    """Matches torch init: randn(2,O,I,G)/(sqrt(I)*grid_norm_factor), zero bias.

    Returns a list of (w, b) with w already in matmul-ready layout (2*G*I, O)
    cast to bf16 for the MXU; b is (1, O) f32. With add_bias=False the torch
    module simply omits a zero-initialized bias, so keeping a zeros bias here is
    numerically identical at init time.
    """
    G = grid_size
    if smooth_initialization:
        gnorm = (jnp.arange(G, dtype=jnp.float32) + 1.0) ** 2
    else:
        gnorm = jnp.sqrt(jnp.float32(G))
    params = []
    for idx, (fin, fout) in enumerate(zip(layers_hidden[:-1], layers_hidden[1:])):
        k = jax.random.fold_in(key, idx)
        coeffs = jax.random.normal(k, (2, fout, fin, G), jnp.float32) / (
            jnp.sqrt(jnp.float32(fin)) * gnorm)                     # (2, O, I, G)
        # (2, O, I, G) -> (2, G, I, O) -> (2*G*I, O): row = trig*G*I + (g-1)*I + i
        w = jnp.transpose(coeffs, (0, 3, 2, 1)).reshape(2 * G * fin, fout)
        params.append((w.astype(jnp.bfloat16), jnp.zeros((1, fout), jnp.float32)))
    return params


def fourier_kan_forward(x, params, *, grid_size, batch_tile=None):
    """Fused FourierKAN forward. x: (..., layers_hidden[0])."""
    G = grid_size
    f_in0 = params[0][0].shape[0] // (2 * G)
    f_out_last = params[-1][0].shape[1]

    # Lane-dense output: pad last layer's weight columns / bias up to a multiple
    # of 128 so the HBM store is unmasked; slice back after the call.
    o_pad = _round_up(f_out_last, _LANE)
    run_params = list(params)
    if o_pad != f_out_last:
        w_l, b_l = run_params[-1]
        run_params[-1] = (jnp.pad(w_l, ((0, 0), (0, o_pad - f_out_last))),
                          jnp.pad(b_l, ((0, 0), (0, o_pad - f_out_last))))

    lead_shape = x.shape[:-1]
    x2 = x.reshape(-1, f_in0).astype(jnp.float32)
    B = x2.shape[0]

    tb = batch_tile if batch_tile is not None else _pick_batch_tile(B)
    budget = _vmem_budget_bytes()
    # Shrink the batch tile if the footprint would not fit the scoped budget.
    while tb >= 16 and tb % 2 == 0 and _vmem_estimate_bytes(run_params, tb, f_in0) > budget:
        tb //= 2
    assert B % tb == 0

    inputs = [x2]
    in_specs = [pl.BlockSpec((tb, f_in0), lambda i: (i, 0))]
    for w, b in run_params:
        inputs += [w, b]
        # Constant index_map -> weights stay resident in VMEM across the grid.
        # TODO(synk): pipeline_mode=pl.Buffered(1) would halve resident-weight
        # VMEM for large layer widths; left at the default for portability.
        in_specs += [pl.BlockSpec(w.shape, lambda i: (0, 0)),
                     pl.BlockSpec(b.shape, lambda i: (0, 0))]

    # Always set the scoped VMEM limit explicitly (v5e default is 16 MiB,
    # v6e/v7x 32 MiB) and clamp it to physical capacity minus headroom
    # (v7x has only 64 MiB per TensorCore).
    est = int(_vmem_estimate_bytes(run_params, tb, f_in0) * 1.25) + (2 << 20)
    vmem_limit = int(min(max(est, 16 * 1024 * 1024), budget))

    kernel = functools.partial(_fused_fourier_kan_kernel,
                               num_layers=len(run_params), grid_size=G)
    y = pl.pallas_call(
        kernel,
        out_shape=jax.ShapeDtypeStruct((B, o_pad), jnp.float32),
        grid_spec=pltpu.PrefetchScalarGridSpec(
            num_scalar_prefetch=0,
            grid=(B // tb,),
            in_specs=in_specs,
            out_specs=pl.BlockSpec((tb, o_pad), lambda i: (i, 0)),
        ),
        compiler_params=pltpu.CompilerParams(
            dimension_semantics=("parallel",),
            vmem_limit_bytes=vmem_limit),
    )(*inputs)
    if o_pad != f_out_last:
        y = y[:, :f_out_last]
    return y.reshape(lead_shape + (f_out_last,))


def fourier_kan_reference(x, params, *, grid_size):
    """Pure-JAX reference (direct cos/sin construction, f32 matmuls)."""
    G = grid_size
    f_in0 = params[0][0].shape[0] // (2 * G)
    h = x.reshape(-1, f_in0).astype(jnp.float32)
    for w, b in params:
        I = w.shape[0] // (2 * G)
        k = jnp.arange(1, G + 1, dtype=jnp.float32)
        arg = h[:, None, :] * k[None, :, None]                 # (B, G, I)
        c = jnp.cos(arg).reshape(h.shape[0], G * I)
        s = jnp.sin(arg).reshape(h.shape[0], G * I)
        basis = jnp.concatenate([c, s], axis=-1)               # (B, 2*G*I)
        h = basis @ w.astype(jnp.float32) + b
    return h


if __name__ == "__main__":
    # Small shapes consistent with the module: layers_hidden=[32, 64, 16],
    # grid_size=3 (module default), add_bias=True, batch=8.
    layers_hidden = [32, 64, 16]
    grid_size = 3
    batch = 8

    key = jax.random.PRNGKey(0)
    kx, kp = jax.random.split(key)
    x = jax.random.normal(kx, (batch, layers_hidden[0]), jnp.float32)
    params = init_fourier_kan_params(kp, layers_hidden, grid_size)

    fwd = jax.jit(functools.partial(fourier_kan_forward, grid_size=grid_size))
    y = jax.block_until_ready(fwd(x, params))
    assert y.shape == (batch, layers_hidden[-1]), y.shape

    # Loose tolerance: the kernel casts the trig basis to bf16 for the MXU.
    y_ref = fourier_kan_reference(x, params, grid_size=grid_size)
    err = float(jnp.max(jnp.abs(y - y_ref)))
    scale = max(1.0, float(jnp.max(jnp.abs(y_ref))))
    assert err <= 5e-2 * scale, (err, scale)
    print("KERNEL_OK")
</pallas_src>

<mosaic_0001>
module attributes {stable_mosaic.version = 11 : i64} {
  func.func @_fused_fourier_kan_kernel(%arg0: i32, %arg1: memref<8x32xf32, #tpu.memory_space<vmem>>, %arg2: memref<192x64xbf16, #tpu.memory_space<vmem>>, %arg3: memref<1x64xf32, #tpu.memory_space<vmem>>, %arg4: memref<384x128xbf16, #tpu.memory_space<vmem>>, %arg5: memref<1x128xf32, #tpu.memory_space<vmem>>, %arg6: memref<8x128xf32, #tpu.memory_space<vmem>>) attributes {dimension_semantics = [#tpu.dimension_semantics<parallel>], iteration_bounds = array<i64: 1>, scalar_prefetch = 0 : i64, scratch_operands = 0 : i64, tpu.core_type = #tpu.core_type<tc>, window_params = [{transform_indices = @transform_0, window_bounds = array<i64: 8, 32>}, {pipeline_mode = #tpu.pipeline_mode<synchronous>, transform_indices = @transform_1, window_bounds = array<i64: 192, 64>}, {pipeline_mode = #tpu.pipeline_mode<synchronous>, transform_indices = @transform_2, window_bounds = array<i64: 1, 64>}, {pipeline_mode = #tpu.pipeline_mode<synchronous>, transform_indices = @transform_3, window_bounds = array<i64: 384, 128>}, {pipeline_mode = #tpu.pipeline_mode<synchronous>, transform_indices = @transform_4, window_bounds = array<i64: 1, 128>}, {transform_indices = @transform_5, window_bounds = array<i64: 8, 128>}]} {
    %c0 = arith.constant 0 : index
    %c0_0 = arith.constant 0 : index
    %0 = vector.load %arg1[%c0, %c0_0] : memref<8x32xf32, #tpu.memory_space<vmem>>, vector<8x32xf32>
    %1 = math.cos %0 : vector<8x32xf32>
    %2 = math.sin %0 : vector<8x32xf32>
    %3 = arith.mulf %1, %1 : vector<8x32xf32>
    %4 = arith.mulf %2, %2 : vector<8x32xf32>
    %5 = arith.subf %3, %4 : vector<8x32xf32>
    %6 = arith.mulf %2, %1 : vector<8x32xf32>
    %7 = arith.mulf %1, %2 : vector<8x32xf32>
    %8 = arith.addf %6, %7 : vector<8x32xf32>
    %9 = arith.mulf %5, %1 : vector<8x32xf32>
    %10 = arith.mulf %8, %2 : vector<8x32xf32>
    %11 = arith.subf %9, %10 : vector<8x32xf32>
    %12 = arith.mulf %8, %1 : vector<8x32xf32>
    %13 = arith.mulf %5, %2 : vector<8x32xf32>
    %14 = arith.addf %12, %13 : vector<8x32xf32>
    %15 = tpu.concatenate %1, %5, %11, %2, %8, %14 in 1 : vector<8x32xf32>, vector<8x32xf32>, vector<8x32xf32>, vector<8x32xf32>, vector<8x32xf32>, vector<8x32xf32> -> vector<8x192xf32>
    %16 = arith.truncf %15 : vector<8x192xf32> to vector<8x192xbf16>
    %c0_1 = arith.constant 0 : index
    %c0_2 = arith.constant 0 : index
    %17 = vector.load %arg2[%c0_1, %c0_2] : memref<192x64xbf16, #tpu.memory_space<vmem>>, vector<192x64xbf16>
    %cst = arith.constant dense<0.000000e+00> : vector<8x64xf32>
    %18 = tpu.matmul %16, %17, %cst {dimension_numbers = #tpu.dot_dimension_numbers<[1], [0], [0], [1], [0, 0, 1, 1], [], []>} : vector<8x192xbf16>, vector<192x64xbf16>, vector<8x64xf32> -> vector<8x64xf32>
    %c0_3 = arith.constant 0 : index
    %c0_4 = arith.constant 0 : index
    %19 = vector.load %arg3[%c0_3, %c0_4] : memref<1x64xf32, #tpu.memory_space<vmem>>, vector<1x64xf32>
    %20 = vector.broadcast %19 : vector<1x64xf32> to vector<8x64xf32>
    %21 = arith.addf %18, %20 : vector<8x64xf32>
    %22 = math.cos %21 : vector<8x64xf32>
    %23 = math.sin %21 : vector<8x64xf32>
    %24 = arith.mulf %22, %22 : vector<8x64xf32>
    %25 = arith.mulf %23, %23 : vector<8x64xf32>
    %26 = arith.subf %24, %25 : vector<8x64xf32>
    %27 = arith.mulf %23, %22 : vector<8x64xf32>
    %28 = arith.mulf %22, %23 : vector<8x64xf32>
    %29 = arith.addf %27, %28 : vector<8x64xf32>
    %30 = arith.mulf %26, %22 : vector<8x64xf32>
    %31 = arith.mulf %29, %23 : vector<8x64xf32>
    %32 = arith.subf %30, %31 : vector<8x64xf32>
    %33 = arith.mulf %29, %22 : vector<8x64xf32>
    %34 = arith.mulf %26, %23 : vector<8x64xf32>
    %35 = arith.addf %33, %34 : vector<8x64xf32>
    %36 = tpu.concatenate %22, %26, %32, %23, %29, %35 in 1 : vector<8x64xf32>, vector<8x64xf32>, vector<8x64xf32>, vector<8x64xf32>, vector<8x64xf32>, vector<8x64xf32> -> vector<8x384xf32>
    %37 = arith.truncf %36 : vector<8x384xf32> to vector<8x384xbf16>
    %c0_5 = arith.constant 0 : index
    %c0_6 = arith.constant 0 : index
    %38 = vector.load %arg4[%c0_5, %c0_6] : memref<384x128xbf16, #tpu.memory_space<vmem>>, vector<384x128xbf16>
    %cst_7 = arith.constant dense<0.000000e+00> : vector<8x128xf32>
    %39 = tpu.matmul %37, %38, %cst_7 {dimension_numbers = #tpu.dot_dimension_numbers<[1], [0], [0], [1], [0, 0, 1, 1], [], []>} : vector<8x384xbf16>, vector<384x128xbf16>, vector<8x128xf32> -> vector<8x128xf32>
    %c0_8 = arith.constant 0 : index
    %c0_9 = arith.constant 0 : index
    %40 = vector.load %arg5[%c0_8, %c0_9] : memref<1x128xf32, #tpu.memory_space<vmem>>, vector<1x128xf32>
    %41 = vector.broadcast %40 : vector<1x128xf32> to vector<8x128xf32>
    %42 = arith.addf %39, %41 : vector<8x128xf32>
    %c0_10 = arith.constant 0 : index
    %c0_11 = arith.constant 0 : index
    %43 = vector.load %arg6[%c0_10, %c0_11] : memref<8x128xf32, #tpu.memory_space<vmem>>, vector<8x128xf32>
    tpu.vector_store %arg6[%c0_10, %c0_11], %42 {strides = array<i32>} : memref<8x128xf32, #tpu.memory_space<vmem>>, vector<8x128xf32>,
    return
  }
  func.func @transform_0(%arg0: i32) -> (i32, i32) {
    %c0_i32 = arith.constant 0 : i32
    %c0_i32_0 = arith.constant 0 : i32
    return %arg0, %c0_i32 : i32, i32
  }
  func.func @transform_1(%arg0: i32) -> (i32, i32) {
    %c0_i32 = arith.constant 0 : i32
    %c0_i32_0 = arith.constant 0 : i32
    %c0_i32_1 = arith.constant 0 : i32
    return %c0_i32, %c0_i32_0 : i32, i32
  }
  func.func @transform_2(%arg0: i32) -> (i32, i32) {
    %c0_i32 = arith.constant 0 : i32
    %c0_i32_0 = arith.constant 0 : i32
    %c0_i32_1 = arith.constant 0 : i32
    return %c0_i32, %c0_i32_0 : i32, i32
  }
  func.func @transform_3(%arg0: i32) -> (i32, i32) {
    %c0_i32 = arith.constant 0 : i32
    %c0_i32_0 = arith.constant 0 : i32
    %c0_i32_1 = arith.constant 0 : i32
    return %c0_i32, %c0_i32_0 : i32, i32
  }
  func.func @transform_4(%arg0: i32) -> (i32, i32) {
    %c0_i32 = arith.constant 0 : i32
    %c0_i32_0 = arith.constant 0 : i32
    %c0_i32_1 = arith.constant 0 : i32
    return %c0_i32, %c0_i32_0 : i32, i32
  }
  func.func @transform_5(%arg0: i32) -> (i32, i32) {
    %c0_i32 = arith.constant 0 : i32
    %c0_i32_0 = arith.constant 0 : i32
    return %arg0, %c0_i32 : i32, i32
  }
}

</mosaic_0001>

<llo_original>
// kernel: fourier_kan_forward.1
$region0: #{fourier_kan_forward.1}
  #allocation0 [shape = 'u32[]', space=smem, size = 0x4, offset = 0x4, fixed_abs, tag = 'smem constant byte address 0x4 - core index']
  #allocation1 [shape = 'u32[144,128]{1,0:T(1,128)}', space=vmem, size = 0x12000, scoped, tag = 'internal scratch']
  %s0 = inlined_call_operand.vmem [shape: f32[8,32], index: 0, kind: input, shape index: {}]
  %s1 = inlined_call_operand.vmem [shape: bf16[192,64], index: 1, kind: input, shape index: {}]
  %s2 = inlined_call_operand.vmem [shape: f32[1,64], index: 2, kind: input, shape index: {}]
  %s3 = inlined_call_operand.vmem [shape: bf16[384,128], index: 3, kind: input, shape index: {}]
  %s4 = inlined_call_operand.vmem [shape: f32[1,128], index: 4, kind: input, shape index: {}]
  %s5 = inlined_call_operand.hbm [shape: f32[8,128], index: 5, kind: output, shape index: {}]
  %s6 = sld [smem:[#allocation0]]
  $region30: #{fourier_kan_forward.1} parent=0
    _
  %s8 = ssub.s32 1, %s6
  %s9 = scalar_select 0, %s8, %s6
  $region1: #{fourier_kan_forward.1} parent=0
    #allocation2 [shape = 'u8[4096]{0}', space=vmem, size = 0x1000, scoped, tag = 'output window, operand 0, single buffered']
    #allocation3 [shape = 's32[1]{0}', space=sflag, size = 0x4, scoped, tag = 'scoped memory for fourier_kan_forward.1']
    %10 = vsyncpa [#allocation3], 0
    // Predicated region
    $region2: #{fourier_kan_forward.1} parent=1 // pred_check
      _
    $region3: #{fourier_kan_forward.1} parent=1 // pred_check_branch
      %12 = sbr.rel (0) target = $region5
    $region4: #{fourier_kan_forward.1} parent=1 // pred_region
      _
    $region5: #{fourier_kan_forward.1} parent=1 // pred_fallthru
      _
    // Predicated region
    $region6: #{fourier_kan_forward.1} parent=1 // pred_check
      _
    $region7: #{fourier_kan_forward.1} parent=1 // pred_check_branch
      %14 = sbr.rel (0) target = $region9
    $region8: #{fourier_kan_forward.1} parent=1 // pred_region
      _
    $region9: #{fourier_kan_forward.1} parent=1 // pred_fallthru
      _
    // Predicated region
    $region10: #{fourier_kan_forward.1} parent=1 // pred_check
      _
    $region11: #{fourier_kan_forward.1} parent=1 // pred_check_branch
      %16 = sbr.rel (0) target = $region13
    $region12: #{fourier_kan_forward.1} parent=1 // pred_region
      _
    $region13: #{fourier_kan_forward.1} parent=1 // pred_fallthru
      _
    // Predicated region
    $region14: #{fourier_kan_forward.1} parent=1 // pred_check
      _
    $region15: #{fourier_kan_forward.1} parent=1 // pred_check_branch
      %18 = sbr.rel (0) target = $region17
    $region16: #{fourier_kan_forward.1} parent=1 // pred_region
      _
    $region17: #{fourier_kan_forward.1} parent=1 // pred_fallthru
      _
    // Predicated region
    $region18: #{fourier_kan_forward.1} parent=1 // pred_check
      _
    $region19: #{fourier_kan_forward.1} parent=1 // pred_check_branch
      %20 = sbr.rel (0) target = $region21
    $region20: #{fourier_kan_forward.1} parent=1 // pred_region
      _
    $region21: #{fourier_kan_forward.1} parent=1 // pred_fallthru
      _
    %v22 = vld [vmem:[%s0] sm:$0xff]
    %v23 = vand.u32 2147483647, %v22
    %vm24 = vcmp.le.f32.partialorder %v23, 0.7853982
    %vm25 = vcmp.lt.s32.totalorder %v22, 0
    %v26 = vand.u32 %v22, 2139095040
    %v27 = vshrl.u32 %v26, 23
    %v28 = vsub.s32 %v27, 127
    %v29 = vand.u32 2147483647, %v22
    %v30 = vand.u32 %v29, 8388607
    %v31 = vor.u32 %v30, 8388608
    %v32 = vsub.s32 0, %v31
    %v33 = vadd.s32 %v28, 1
    %vm34 = vcmp.gt.s32.totalorder %v33, 0
    %v35 = vsel %vm34, %v33, 0
    %v36 = vshrl.u32 %v35, 5
    %v37 = vand.u32 %v35, 31
    %v38 = vsub.s32 32, %v37
    %v39 = vshrl.u32 683565275, %v38
    %v40 = vshll.u32 683565275, %v37
    %v41 = vshrl.u32 2475754826, %v38
    %v42 = vor.u32 %v40, %v41
    %v43 = vshll.u32 2475754826, %v37
    %v44 = vshrl.u32 2131351028, %v38
    %v45 = vor.u32 %v43, %v44
    %v46 = vshll.u32 2131351028, %v37
    %v47 = vshrl.u32 2102212464, %v38
    %v48 = vor.u32 %v46, %v47
    %v49 = vshll.u32 2102212464, %v37
    %v50 = vshrl.u32 920167782, %v38
    %v51 = vor.u32 %v49, %v50
    %v52 = vshll.u32 920167782, %v37
    %v53 = vshrl.u32 1326507024, %v38
    %v54 = vor.u32 %v52, %v53
    %vm55 = vcmp.lt.s32.totalorder %v36, 1
    %vm56 = vcmp.lt.s32.totalorder %v36, 2
    %vm57 = vcmp.lt.s32.totalorder %v36, 3
    %vm58 = vcmp.lt.s32.totalorder %v36, 4
    %v59 = vsel %vm55, %v39, %v42
    %v60 = vsel %vm58, %v48, 2102212464
    %v61 = vsel %vm57, %v45, %v60
    %v62 = vsel %vm56, %v59, %v61
    %v63 = vsel %vm55, %v42, %v45
    %v64 = vsel %vm58, %v51, 920167782
    %v65 = vsel %vm57, %v48, %v64
    %v66 = vsel %vm56, %v63, %v65
    %v67 = vsel %vm55, %v45, %v48
    %v68 = vsel %vm58, %v54, 1326507024
    %v69 = vsel %vm57, %v51, %v68
    %v70 = vsel %vm56, %v67, %v69
    %v71 = vshll.u32 %v31, 8
    %v72 = vmul.u32.u64.compose %v71, %v70
    %v73 = vextract.low.u32 %v72
    %v74 = vextract.high.u32 %v72
    %v75 = vmul.u32.u64.compose %v71, %v66
    %v76 = vextract.low.u32 %v75
    %v77 = vextract.high.u32 %v75
    %v78 = vmul.u32 %v71, %v62
    %v79 = vadd.s32 %v74, %v76
    %vm80 = vc.u32 %v74, %v76
    %v81 = vadd.s32 %v77, 1
    %v82 = vsel %vm80, %v81, %v77
    %v83 = vadd.s32 %v78, %v82
    %v84 = vadd.s32 %v83, 536870912
    %v85 = vshrl.u32 %v84, 30
    %v86 = vshll.u32 %v85, 30
    %v87 = vsub.s32 %v83, %v86
    %vm88 = vcmp.lt.s32.totalorder %v87, 0
    %v89 = vsub.s32 0, %v87
    %v90 = vsel %vm88, %v89, %v87
    %v91 = vclz %v90
    %v92 = vsub.s32 %v91, 2
    %vm93 = vcmp.gt.s32.totalorder 0, %v92
    %v94 = vsel %vm93, 0, %v92
    %v95 = vsub.s32 32, %v94
    %v96 = vshll.u32 %v87, %v94
    %v97 = vshrl.u32 %v79, %v95
    %v98 = vor.u32 %v96, %v97
    %v99 = vsub.s32 4294967266, %v94
    %v100 = vadd.s32 %v99, 127
    %v101 = vshll.u32 %v100, 23
    %v102 = vor.u32 4788187, %v101
    %v103 = vand.u32 2147483647, %v102
    %v105 = vcvt.s32.f32 %v98
    %v106 = vmul.f32 %v105, %v103
    %v107 = vxor.u32 %v106, 2147483648
    %v108 = vsel %vm25, %v107, %v106
    %v109 = vsub.s32 4, %v85
    %v110 = vsel %vm25, %v109, %v85
    %v111 = vsel %vm24, %v22, %v108
    %v112 = vsel %vm24, 0, %v110
    %v113 = vcosq.f32.pop %v111
    %v114 = vsinq.f32.pop %v111
    %vm115 = vweird.f32 %v22
    %v116 = vand.u32 %v112, 3
    %vm117 = vcmp.lt.s32.totalorder %v116, 2
    %vm118 = vcmp.eq.s32.totalorder %v116, 0
    %v119 = vxor.u32 %v114, 2147483648
    %v120 = vsel %vm118, %v113, %v119
    %vm121 = vcmp.eq.s32.totalorder %v116, 2
    %v122 = vxor.u32 %v113, 2147483648
    %v123 = vsel %vm121, %v122, %v114
    %v124 = vsel %vm117, %v120, %v123
    %v125 = vsel %vm115, nan, %v124
    %v126 = vand.u32 2147483647, %v22
    %vm127 = vcmp.le.f32.partialorder %v126, 0.7853982
    %vm128 = vcmp.lt.s32.totalorder %v22, 0
    %v129 = vand.u32 %v22, 2139095040
    %v130 = vshrl.u32 %v129, 23
    %v131 = vsub.s32 %v130, 127
    %v132 = vand.u32 2147483647, %v22
    %v133 = vand.u32 %v132, 8388607
    %v134 = vor.u32 %v133, 8388608
    %v135 = vsub.s32 0, %v134
    %v136 = vadd.s32 %v131, 1
    %vm137 = vcmp.gt.s32.totalorder %v136, 0
    %v138 = vsel %vm137, %v136, 0
    %v139 = vshrl.u32 %v138, 5
    %v140 = vand.u32 %v138, 31
    %v141 = vsub.s32 32, %v140
    %v142 = vshrl.u32 683565275, %v141
    %v143 = vshll.u32 683565275, %v140
    %v144 = vshrl.u32 2475754826, %v141
    %v145 = vor.u32 %v143, %v144
    %v146 = vshll.u32 2475754826, %v140
    %v147 = vshrl.u32 2131351028, %v141
    %v148 = vor.u32 %v146, %v147
    %v149 = vshll.u32 2131351028, %v140
    %v150 = vshrl.u32 2102212464, %v141
    %v151 = vor.u32 %v149, %v150
    %v152 = vshll.u32 2102212464, %v140
    %v153 = vshrl.u32 920167782, %v141
    %v154 = vor.u32 %v152, %v153
    %v155 = vshll.u32 920167782, %v140
    %v156 = vshrl.u32 1326507024, %v141
    %v157 = vor.u32 %v155, %v156
    %vm158 = vcmp.lt.s32.totalorder %v139, 1
    %vm159 = vcmp.lt.s32.totalorder %v139, 2
    %vm160 = vcmp.lt.s32.totalorder %v139, 3
    %vm161 = vcmp.lt.s32.totalorder %v139, 4
    %v162 = vsel %vm158, %v142, %v145
    %v163 = vsel %vm161, %v151, 2102212464
    %v164 = vsel %vm160, %v148, %v163
    %v165 = vsel %vm159, %v162, %v164
    %v166 = vsel %vm158, %v145, %v148
    %v167 = vsel %vm161, %v154, 920167782
    %v168 = vsel %vm160, %v151, %v167
    %v169 = vsel %vm159, %v166, %v168
    %v170 = vsel %vm158, %v148, %v151
    %v171 = vsel %vm161, %v157, 1326507024
    %v172 = vsel %vm160, %v154, %v171
    %v173 = vsel %vm159, %v170, %v172
    %v174 = vshll.u32 %v134, 8
    %v175 = vmul.u32.u64.compose %v174, %v173
    %v176 = vextract.low.u32 %v175
    %v177 = vextract.high.u32 %v175
    %v178 = vmul.u32.u64.compose %v174, %v169
    %v179 = vextract.low.u32 %v178
    %v180 = vextract.high.u32 %v178
    %v181 = vmul.u32 %v174, %v165
    %v182 = vadd.s32 %v177, %v179
    %vm183 = vc.u32 %v177, %v179
    %v184 = vadd.s32 %v180, 1
    %v185 = vsel %vm183, %v184, %v180
    %v186 = vadd.s32 %v181, %v185
    %v187 = vadd.s32 %v186, 536870912
    %v188 = vshrl.u32 %v187, 30
    %v189 = vshll.u32 %v188, 30
    %v190 = vsub.s32 %v186, %v189
    %vm191 = vcmp.lt.s32.totalorder %v190, 0
    %v192 = vsub.s32 0, %v190
    %v193 = vsel %vm191, %v192, %v190
    %v194 = vclz %v193
    %v195 = vsub.s32 %v194, 2
    %vm196 = vcmp.gt.s32.totalorder 0, %v195
    %v197 = vsel %vm196, 0, %v195
    %v198 = vsub.s32 32, %v197
    %v199 = vshll.u32 %v190, %v197
    %v200 = vshrl.u32 %v182, %v198
    %v201 = vor.u32 %v199, %v200
    %v202 = vsub.s32 4294967266, %v197
    %v203 = vadd.s32 %v202, 127
    %v204 = vshll.u32 %v203, 23
    %v205 = vor.u32 4788187, %v204
    %v206 = vand.u32 2147483647, %v205
    %v208 = vcvt.s32.f32 %v201
    %v209 = vmul.f32 %v208, %v206
    %v210 = vxor.u32 %v209, 2147483648
    %v211 = vsel %vm128, %v210, %v209
    %v212 = vsub.s32 4, %v188
    %v213 = vsel %vm128, %v212, %v188
    %v214 = vsel %vm127, %v22, %v211
    %v215 = vsel %vm127, 0, %v213
    %v216 = vcosq.f32.pop %v214
    %v217 = vsinq.f32.pop %v214
    %vm218 = vweird.f32 %v22
    %v219 = vadd.s32 %v215, 3
    %v220 = vand.u32 %v219, 3
    %vm221 = vcmp.lt.s32.totalorder %v220, 2
    %vm222 = vcmp.eq.s32.totalorder %v220, 0
    %v223 = vxor.u32 %v217, 2147483648
    %v224 = vsel %vm222, %v216, %v223
    %vm225 = vcmp.eq.s32.totalorder %v220, 2
    %v226 = vxor.u32 %v216, 2147483648
    %v227 = vsel %vm225, %v226, %v217
    %v228 = vsel %vm221, %v224, %v227
    %v229 = vsel %vm218, nan, %v228
    %v230 = vmul.f32 %v125, %v125
    %v231 = vmul.f32 %v229, %v229
    %v232 = vsub.f32 %v230, %v231
    %v233 = vmul.f32 %v229, %v125
    %v234 = vadd.f32 %v233, %v233
    %v235 = vmul.f32 %v232, %v125
    %v236 = vmul.f32 %v234, %v229
    %v237 = vsub.f32 %v235, %v236
    %v238 = vmul.f32 %v234, %v125
    %v239 = vmul.f32 %v232, %v229
    %v240 = vadd.f32 %v238, %v239
    %242 = vrot.lane.b32.xlu0 %v232, 32
    %v243 = vpop.permute.xlu0 %242
    %246 = vrot.lane.b32.xlu0 %v237, 64
    %v247 = vpop.permute.xlu0 %246
    %250 = vrot.lane.b32.xlu0 %v229, 96
    %v251 = vpop.permute.xlu0 %250
    %254 = vrot.lane.b32.xlu0 %v240, 32
    %v255 = vpop.permute.xlu0 %254
    %vm257 = vcmask 261120
    %v258 = vsel %vm257, %v125, %v243
    %vm259 = vcmask 523264
    %v260 = vsel %vm259, %v258, %v247
    %vm261 = vcmask 785408
    %v262 = vsel %vm261, %v260, %v251
    %v263 = vsel %vm257, %v234, %v255
    %v264 = vpack.c.bf16 %v262, %v262
    %v265 = vpack.c.bf16 %v263, %v263
    %v266 = vld [vmem:[%s1] sm:$0xf]
    %v267 = vld [vmem:[%s1 + $0x4] sm:$0xf]
    %v268 = vld [vmem:[%s1 + $0x8] sm:$0xf]
    %v269 = vld [vmem:[%s1 + $0xc] sm:$0xf]
    %v270 = vld [vmem:[%s1 + $0x10] sm:$0xf]
    %v271 = vld [vmem:[%s1 + $0x14] sm:$0xf]
    %v272 = vld [vmem:[%s1 + $0x18] sm:$0xf]
    %v273 = vld [vmem:[%s1 + $0x1c] sm:$0xf]
    %v274 = vld [vmem:[%s1 + $0x20] sm:$0xf]
    %v275 = vld [vmem:[%s1 + $0x24] sm:$0xf]
    %v276 = vld [vmem:[%s1 + $0x28] sm:$0xf]
    %v277 = vld [vmem:[%s1 + $0x2c] sm:$0xf]
    %v278 = vld [vmem:[%s1 + $0x30] sm:$0xf]
    %v279 = vld [vmem:[%s1 + $0x34] sm:$0xf]
    %v280 = vld [vmem:[%s1 + $0x38] sm:$0xf]
    %v281 = vld [vmem:[%s1 + $0x3c] sm:$0xf]
    %v282 = vld [vmem:[%s1 + $0x40] sm:$0xf]
    %v283 = vld [vmem:[%s1 + $0x44] sm:$0xf]
    %v284 = vld [vmem:[%s1 + $0x48] sm:$0xf]
    %v285 = vld [vmem:[%s1 + $0x4c] sm:$0xf]
    %v286 = vld [vmem:[%s1 + $0x50] sm:$0xf]
    %v287 = vld [vmem:[%s1 + $0x54] sm:$0xf]
    %v288 = vld [vmem:[%s1 + $0x58] sm:$0xf]
    %v289 = vld [vmem:[%s1 + $0x5c] sm:$0xf]
    %v290 = vld [vmem:[%s2] sm:$0x1]
    %v292 = vlaneseq
    %v293 = vshrl.u32 %v292, 7
    %v294 = vsub.s32 0, %v293
    %v295 = vrot.slane %v290, %v294
    %v321 = vunpack.c.l.b16 %v266
    %v322 = vunpack.c.l.b16 %v267
    %v323 = vunpack.c.l.b16 %v268
    %v324 = vunpack.c.l.b16 %v269
    %v325 = vunpack.c.l.b16 %v270
    %v326 = vunpack.c.l.b16 %v271
    %v327 = vunpack.c.l.b16 %v272
    %v328 = vunpack.c.l.b16 %v273
    %v329 = vunpack.c.l.b16 %v274
    %v330 = vunpack.c.l.b16 %v275
    %v331 = vunpack.c.l.b16 %v276
    %v332 = vunpack.c.l.b16 %v277
    %v333 = vunpack.c.l.b16 %v278
    %v334 = vunpack.c.l.b16 %v279
    %v335 = vunpack.c.l.b16 %v280
    %v336 = vunpack.c.l.b16 %v281
    %v337 = vunpack.c.l.b16 %v282
    %v338 = vunpack.c.l.b16 %v283
    %v339 = vunpack.c.l.b16 %v284
    %v340 = vunpack.c.l.b16 %v285
    %v341 = vunpack.c.l.b16 %v286
    %v342 = vunpack.c.l.b16 %v287
    %v343 = vunpack.c.l.b16 %v288
    %v344 = vunpack.c.l.b16 %v289
    %v345 = vpack.c.b16 %v322, %v321
    %v346 = vpack.c.b16 %v324, %v323
    %v347 = vpack.c.b16 %v326, %v325
    %v348 = vpack.c.b16 %v328, %v327
    %v349 = vpack.c.b16 %v330, %v329
    %v350 = vpack.c.b16 %v332, %v331
    %v351 = vpack.c.b16 %v334, %v333
    %v352 = vpack.c.b16 %v336, %v335
    %v353 = vpack.c.b16 %v338, %v337
    %v354 = vpack.c.b16 %v340, %v339
    %v355 = vpack.c.b16 %v342, %v341
    %v356 = vpack.c.b16 %v344, %v343
    %v370 = vsel %vm259, %v265, 0
    %372 = vmatprep.subr.bf16.mxu0 0
    %373 = vmatpush1.bf16.msra.mxu0 %v352
    %374 = vmatprep.subr.bf16.mxu0 0
    %375 = vmatpush1.bf16.msra.mxu0 %v351
    %376 = vmatprep.subr.bf16.mxu0 0
    %377 = vmatpush1.bf16.msra.mxu0 %v350
    %378 = vmatprep.subr.bf16.mxu0 0
    %379 = vmatpush1.bf16.msra.mxu0 %v349
    %380 = vmatprep.subr.bf16.mxu0 0
    %381 = vmatpush1.bf16.msra.mxu0 %v348
    %382 = vmatprep.subr.bf16.mxu0 0
    %383 = vmatpush1.bf16.msra.mxu0 %v347
    %384 = vmatprep.subr.bf16.mxu0 0
    %385 = vmatpush1.bf16.msra.mxu0 %v346
    %386 = vmatprep.subr.bf16.mxu0 0
    %387 = vmatpush1.bf16.msra.mxu0 %v345
    %388 = vmatprep.subr.bf16.mxu0 0
    %389 = vmatpush2.bf16.msra.mxu0 0
    %390 = vmatprep.subr.bf16.mxu0 0
    %391 = vmatpush2.bf16.msra.mxu0 0
    %392 = vmatprep.subr.bf16.mxu0 0
    %393 = vmatpush2.bf16.msra.mxu0 0
    %394 = vmatprep.subr.bf16.mxu0 0
    %395 = vmatpush2.bf16.msra.mxu0 0
    %396 = vmatprep.subr.bf16.mxu0 0
    %397 = vmatpush2.bf16.msra.mxu0 %v356
    %398 = vmatprep.subr.bf16.mxu0 0
    %399 = vmatpush2.bf16.msra.mxu0 %v355
    %400 = vmatprep.subr.bf16.mxu0 0
    %401 = vmatpush2.bf16.msra.mxu0 %v354
    %402 = vmatprep.subr.bf16.mxu0 0
    %403 = vmatpush2.bf16.msra.mxu0 %v353
    %404 = vmatprep.mubr.bf16.mxu0 %v370
    %405 = vmatmul.mubr.bf16.gmra.mxu0 %v264
    %v406 = vpop.f32.mrf.mxu0
    %v407 = vadd.f32 %v295, %v406
    %v408 = vpop.f32.mrf.mxu0
    %v409 = vpop.f32.mrf.mxu0
    %v410 = vpop.f32.mrf.mxu0
    %411 = vdwg.mxu0
    %v412 = vand.u32 2147483647, %v407
    %vm413 = vcmp.le.f32.partialorder %v412, 0.7853982
    %vm414 = vcmp.lt.s32.totalorder %v407, 0
    %v415 = vand.u32 %v407, 2139095040
    %v416 = vshrl.u32 %v415, 23
    %v417 = vsub.s32 %v416, 127
    %v418 = vand.u32 2147483647, %v407
    %v419 = vand.u32 %v418, 8388607
    %v420 = vor.u32 %v419, 8388608
    %v421 = vsub.s32 0, %v420
    %v422 = vadd.s32 %v417, 1
    %vm423 = vcmp.gt.s32.totalorder %v422, 0
    %v424 = vsel %vm423, %v422, 0
    %v425 = vshrl.u32 %v424, 5
    %v426 = vand.u32 %v424, 31
    %v427 = vsub.s32 32, %v426
    %v428 = vshrl.u32 683565275, %v427
    %v429 = vshll.u32 683565275, %v426
    %v430 = vshrl.u32 2475754826, %v427
    %v431 = vor.u32 %v429, %v430
    %v432 = vshll.u32 2475754826, %v426
    %v433 = vshrl.u32 2131351028, %v427
    %v434 = vor.u32 %v432, %v433
    %v435 = vshll.u32 2131351028, %v426
    %v436 = vshrl.u32 2102212464, %v427
    %v437 = vor.u32 %v435, %v436
    %v438 = vshll.u32 2102212464, %v426
    %v439 = vshrl.u32 920167782, %v427
    %v440 = vor.u32 %v438, %v439
    %v441 = vshll.u32 920167782, %v426
    %v442 = vshrl.u32 1326507024, %v427
    %v443 = vor.u32 %v441, %v442
    %vm444 = vcmp.lt.s32.totalorder %v425, 1
    %vm445 = vcmp.lt.s32.totalorder %v425, 2
    %vm446 = vcmp.lt.s32.totalorder %v425, 3
    %vm447 = vcmp.lt.s32.totalorder %v425, 4
    %v448 = vsel %vm444, %v428, %v431
    %v449 = vsel %vm447, %v437, 2102212464
    %v450 = vsel %vm446, %v434, %v449
    %v451 = vsel %vm445, %v448, %v450
    %v452 = vsel %vm444, %v431, %v434
    %v453 = vsel %vm447, %v440, 920167782
    %v454 = vsel %vm446, %v437, %v453
    %v455 = vsel %vm445, %v452, %v454
    %v456 = vsel %vm444, %v434, %v437
    %v457 = vsel %vm447, %v443, 1326507024
    %v458 = vsel %vm446, %v440, %v457
    %v459 = vsel %vm445, %v456, %v458
    %v460 = vshll.u32 %v420, 8
    %v461 = vmul.u32.u64.compose %v460, %v459
    %v462 = vextract.low.u32 %v461
    %v463 = vextract.high.u32 %v461
    %v464 = vmul.u32.u64.compose %v460, %v455
    %v465 = vextract.low.u32 %v464
    %v466 = vextract.high.u32 %v464
    %v467 = vmul.u32 %v460, %v451
    %v468 = vadd.s32 %v463, %v465
    %vm469 = vc.u32 %v463, %v465
    %v470 = vadd.s32 %v466, 1
    %v471 = vsel %vm469, %v470, %v466
    %v472 = vadd.s32 %v467, %v471
    %v473 = vadd.s32 %v472, 536870912
    %v474 = vshrl.u32 %v473, 30
    %v475 = vshll.u32 %v474, 30
    %v476 = vsub.s32 %v472, %v475
    %vm477 = vcmp.lt.s32.totalorder %v476, 0
    %v478 = vsub.s32 0, %v476
    %v479 = vsel %vm477, %v478, %v476
    %v480 = vclz %v479
    %v481 = vsub.s32 %v480, 2
    %vm482 = vcmp.gt.s32.totalorder 0, %v481
    %v483 = vsel %vm482, 0, %v481
    %v484 = vsub.s32 32, %v483
    %v485 = vshll.u32 %v476, %v483
    %v486 = vshrl.u32 %v468, %v484
    %v487 = vor.u32 %v485, %v486
    %v488 = vsub.s32 4294967266, %v483
    %v489 = vadd.s32 %v488, 127
    %v490 = vshll.u32 %v489, 23
    %v491 = vor.u32 4788187, %v490
    %v492 = vand.u32 2147483647, %v491
    %v494 = vcvt.s32.f32 %v487
    %v495 = vmul.f32 %v494, %v492
    %v496 = vxor.u32 %v495, 2147483648
    %v497 = vsel %vm414, %v496, %v495
    %v498 = vsub.s32 4, %v474
    %v499 = vsel %vm414, %v498, %v474
    %v500 = vsel %vm413, %v407, %v497
    %v501 = vsel %vm413, 0, %v499
    %v502 = vcosq.f32.pop %v500
    %v503 = vsinq.f32.pop %v500
    %vm504 = vweird.f32 %v407
    %v505 = vand.u32 %v501, 3
    %vm506 = vcmp.lt.s32.totalorder %v505, 2
    %vm507 = vcmp.eq.s32.totalorder %v505, 0
    %v508 = vxor.u32 %v503, 2147483648
    %v509 = vsel %vm507, %v502, %v508
    %vm510 = vcmp.eq.s32.totalorder %v505, 2
    %v511 = vxor.u32 %v502, 2147483648
    %v512 = vsel %vm510, %v511, %v503
    %v513 = vsel %vm506, %v509, %v512
    %v514 = vsel %vm504, nan, %v513
    %v515 = vand.u32 2147483647, %v407
    %vm516 = vcmp.le.f32.partialorder %v515, 0.7853982
    %vm517 = vcmp.lt.s32.totalorder %v407, 0
    %v518 = vand.u32 %v407, 2139095040
    %v519 = vshrl.u32 %v518, 23
    %v520 = vsub.s32 %v519, 127
    %v521 = vand.u32 2147483647, %v407
    %v522 = vand.u32 %v521, 8388607
    %v523 = vor.u32 %v522, 8388608
    %v524 = vsub.s32 0, %v523
    %v525 = vadd.s32 %v520, 1
    %vm526 = vcmp.gt.s32.totalorder %v525, 0
    %v527 = vsel %vm526, %v525, 0
    %v528 = vshrl.u32 %v527, 5
    %v529 = vand.u32 %v527, 31
    %v530 = vsub.s32 32, %v529
    %v531 = vshrl.u32 683565275, %v530
    %v532 = vshll.u32 683565275, %v529
    %v533 = vshrl.u32 2475754826, %v530
    %v534 = vor.u32 %v532, %v533
    %v535 = vshll.u32 2475754826, %v529
    %v536 = vshrl.u32 2131351028, %v530
    %v537 = vor.u32 %v535, %v536
    %v538 = vshll.u32 2131351028, %v529
    %v539 = vshrl.u32 2102212464, %v530
    %v540 = vor.u32 %v538, %v539
    %v541 = vshll.u32 2102212464, %v529
    %v542 = vshrl.u32 920167782, %v530
    %v543 = vor.u32 %v541, %v542
    %v544 = vshll.u32 920167782, %v529
    %v545 = vshrl.u32 1326507024, %v530
    %v546 = vor.u32 %v544, %v545
    %vm547 = vcmp.lt.s32.totalorder %v528, 1
    %vm548 = vcmp.lt.s32.totalorder %v528, 2
    %vm549 = vcmp.lt.s32.totalorder %v528, 3
    %vm550 = vcmp.lt.s32.totalorder %v528, 4
    %v551 = vsel %vm547, %v531, %v534
    %v552 = vsel %vm550, %v540, 2102212464
    %v553 = vsel %vm549, %v537, %v552
    %v554 = vsel %vm548, %v551, %v553
    %v555 = vsel %vm547, %v534, %v537
    %v556 = vsel %vm550, %v543, 920167782
    %v557 = vsel %vm549, %v540, %v556
    %v558 = vsel %vm548, %v555, %v557
    %v559 = vsel %vm547, %v537, %v540
    %v560 = vsel %vm550, %v546, 1326507024
    %v561 = vsel %vm549, %v543, %v560
    %v562 = vsel %vm548, %v559, %v561
    %v563 = vshll.u32 %v523, 8
    %v564 = vmul.u32.u64.compose %v563, %v562
    %v565 = vextract.low.u32 %v564
    %v566 = vextract.high.u32 %v564
    %v567 = vmul.u32.u64.compose %v563, %v558
    %v568 = vextract.low.u32 %v567
    %v569 = vextract.high.u32 %v567
    %v570 = vmul.u32 %v563, %v554
    %v571 = vadd.s32 %v566, %v568
    %vm572 = vc.u32 %v566, %v568
    %v573 = vadd.s32 %v569, 1
    %v574 = vsel %vm572, %v573, %v569
    %v575 = vadd.s32 %v570, %v574
    %v576 = vadd.s32 %v575, 536870912
    %v577 = vshrl.u32 %v576, 30
    %v578 = vshll.u32 %v577, 30
    %v579 = vsub.s32 %v575, %v578
    %vm580 = vcmp.lt.s32.totalorder %v579, 0
    %v581 = vsub.s32 0, %v579
    %v582 = vsel %vm580, %v581, %v579
    %v583 = vclz %v582
    %v584 = vsub.s32 %v583, 2
    %vm585 = vcmp.gt.s32.totalorder 0, %v584
    %v586 = vsel %vm585, 0, %v584
    %v587 = vsub.s32 32, %v586
    %v588 = vshll.u32 %v579, %v586
    %v589 = vshrl.u32 %v571, %v587
    %v590 = vor.u32 %v588, %v589
    %v591 = vsub.s32 4294967266, %v586
    %v592 = vadd.s32 %v591, 127
    %v593 = vshll.u32 %v592, 23
    %v594 = vor.u32 4788187, %v593
    %v595 = vand.u32 2147483647, %v594
    %v597 = vcvt.s32.f32 %v590
    %v598 = vmul.f32 %v597, %v595
    %v599 = vxor.u32 %v598, 2147483648
    %v600 = vsel %vm517, %v599, %v598
    %v601 = vsub.s32 4, %v577
    %v602 = vsel %vm517, %v601, %v577
    %v603 = vsel %vm516, %v407, %v600
    %v604 = vsel %vm516, 0, %v602
    %v605 = vcosq.f32.pop %v603
    %v606 = vsinq.f32.pop %v603
    %vm607 = vweird.f32 %v407
    %v608 = vadd.s32 %v604, 3
    %v609 = vand.u32 %v608, 3
    %vm610 = vcmp.lt.s32.totalorder %v609, 2
    %vm611 = vcmp.eq.s32.totalorder %v609, 0
    %v612 = vxor.u32 %v606, 2147483648
    %v613 = vsel %vm611, %v605, %v612
    %vm614 = vcmp.eq.s32.totalorder %v609, 2
    %v615 = vxor.u32 %v605, 2147483648
    %v616 = vsel %vm614, %v615, %v606
    %v617 = vsel %vm610, %v613, %v616
    %v618 = vsel %vm607, nan, %v617
    %v619 = vmul.f32 %v514, %v514
    %v620 = vmul.f32 %v618, %v618
    %v621 = vsub.f32 %v619, %v620
    %v622 = vmul.f32 %v618, %v514
    %v623 = vadd.f32 %v622, %v622
    %v624 = vmul.f32 %v621, %v514
    %v625 = vmul.f32 %v623, %v618
    %v626 = vsub.f32 %v624, %v625
    %v627 = vmul.f32 %v623, %v514
    %v628 = vmul.f32 %v621, %v618
    %v629 = vadd.f32 %v627, %v628
    %631 = vrot.lane.b32.xlu0 %v621, 64
    %v632 = vpop.permute.xlu0 %631
    %635 = vrot.lane.b32.xlu0 %v618, 64
    %v636 = vpop.permute.xlu0 %635
    %639 = vrot.lane.b32.xlu0 %v629, 64
    %v640 = vpop.permute.xlu0 %639
    %v642 = vsel %vm259, %v514, %v632
    %v643 = vsel %vm259, %v626, %v636
    %v644 = vsel %vm259, %v623, %v640
    %v645 = vpack.c.bf16 %v642, %v642
    %v646 = vpack.c.bf16 %v643, %v643
    %v647 = vpack.c.bf16 %v644, %v644
    %v648 = vld [vmem:[%s3] sm:$0xf]
    %v649 = vld [vmem:[%s3 + $0x4] sm:$0xf]
    %v650 = vld [vmem:[%s3 + $0x8] sm:$0xf]
    %v651 = vld [vmem:[%s3 + $0xc] sm:$0xf]
    %v652 = vld [vmem:[%s3 + $0x10] sm:$0xf]
    %v653 = vld [vmem:[%s3 + $0x14] sm:$0xf]
    %v654 = vld [vmem:[%s3 + $0x18] sm:$0xf]
    %v655 = vld [vmem:[%s3 + $0x1c] sm:$0xf]
    %v656 = vld [vmem:[%s3 + $0x20] sm:$0xf]
    %v657 = vld [vmem:[%s3 + $0x24] sm:$0xf]
    %v658 = vld [vmem:[%s3 + $0x28] sm:$0xf]
    %v659 = vld [vmem:[%s3 + $0x2c] sm:$0xf]
    %v660 = vld [vmem:[%s3 + $0x30] sm:$0xf]
    %v661 = vld [vmem:[%s3 + $0x34] sm:$0xf]
    %v662 = vld [vmem:[%s3 + $0x38] sm:$0xf]
    %v663 = vld [vmem:[%s3 + $0x3c] sm:$0xf]
    %v664 = vld [vmem:[%s3 + $0x40] sm:$0xf]
    %v665 = vld [vmem:[%s3 + $0x44] sm:$0xf]
    %v666 = vld [vmem:[%s3 + $0x48] sm:$0xf]
    %v667 = vld [vmem:[%s3 + $0x4c] sm:$0xf]
    %v668 = vld [vmem:[%s3 + $0x50] sm:$0xf]
    %v669 = vld [vmem:[%s3 + $0x54] sm:$0xf]
    %v670 = vld [vmem:[%s3 + $0x58] sm:$0xf]
    %v671 = vld [vmem:[%s3 + $0x5c] sm:$0xf]
    %v672 = vld [vmem:[%s3 + $0x60] sm:$0xf]
    %v673 = vld [vmem:[%s3 + $0x64] sm:$0xf]
    %v674 = vld [vmem:[%s3 + $0x68] sm:$0xf]
    %v675 = vld [vmem:[%s3 + $0x6c] sm:$0xf]
    %v676 = vld [vmem:[%s3 + $0x70] sm:$0xf]
    %v677 = vld [vmem:[%s3 + $0x74] sm:$0xf]
    %v678 = vld [vmem:[%s3 + $0x78] sm:$0xf]
    %v679 = vld [vmem:[%s3 + $0x7c] sm:$0xf]
    %v680 = vld [vmem:[%s3 + $0x80] sm:$0xf]
    %v681 = vld [vmem:[%s3 + $0x84] sm:$0xf]
    %v682 = vld [vmem:[%s3 + $0x88] sm:$0xf]
    %v683 = vld [vmem:[%s3 + $0x8c] sm:$0xf]
    %v684 = vld [vmem:[%s3 + $0x90] sm:$0xf]
    %v685 = vld [vmem:[%s3 + $0x94] sm:$0xf]
    %v686 = vld [vmem:[%s3 + $0x98] sm:$0xf]
    %v687 = vld [vmem:[%s3 + $0x9c] sm:$0xf]
    %v688 = vld [vmem:[%s3 + $0xa0] sm:$0xf]
    %v689 = vld [vmem:[%s3 + $0xa4] sm:$0xf]
    %v690 = vld [vmem:[%s3 + $0xa8] sm:$0xf]
    %v691 = vld [vmem:[%s3 + $0xac] sm:$0xf]
    %v692 = vld [vmem:[%s3 + $0xb0] sm:$0xf]
    %v693 = vld [vmem:[%s3 + $0xb4] sm:$0xf]
    %v694 = vld [vmem:[%s3 + $0xb8] sm:$0xf]
    %v695 = vld [vmem:[%s3 + $0xbc] sm:$0xf]
    %v696 = vld [vmem:[%s4] sm:$0x1]
    %v698 = vlaneseq
    %v699 = vshrl.u32 %v698, 7
    %v700 = vsub.s32 0, %v699
    %v701 = vrot.slane %v696, %v700
    %v751 = vunpack.c.l.b16 %v648
    %v752 = vunpack.c.l.b16 %v649
    %v753 = vunpack.c.l.b16 %v650
    %v754 = vunpack.c.l.b16 %v651
    %v755 = vunpack.c.l.b16 %v652
    %v756 = vunpack.c.l.b16 %v653
    %v757 = vunpack.c.l.b16 %v654
    %v758 = vunpack.c.l.b16 %v655
    %v759 = vunpack.c.l.b16 %v656
    %v760 = vunpack.c.l.b16 %v657
    %v761 = vunpack.c.l.b16 %v658
    %v762 = vunpack.c.l.b16 %v659
    %v763 = vunpack.c.l.b16 %v660
    %v764 = vunpack.c.l.b16 %v661
    %v765 = vunpack.c.l.b16 %v662
    %v766 = vunpack.c.l.b16 %v663
    %v767 = vunpack.c.l.b16 %v664
    %v768 = vunpack.c.l.b16 %v665
    %v769 = vunpack.c.l.b16 %v666
    %v770 = vunpack.c.l.b16 %v667
    %v771 = vunpack.c.l.b16 %v668
    %v772 = vunpack.c.l.b16 %v669
    %v773 = vunpack.c.l.b16 %v670
    %v774 = vunpack.c.l.b16 %v671
    %v775 = vunpack.c.l.b16 %v672
    %v776 = vunpack.c.l.b16 %v673
    %v777 = vunpack.c.l.b16 %v674
    %v778 = vunpack.c.l.b16 %v675
    %v779 = vunpack.c.l.b16 %v676
    %v780 = vunpack.c.l.b16 %v677
    %v781 = vunpack.c.l.b16 %v678
    %v782 = vunpack.c.l.b16 %v679
    %v783 = vunpack.c.l.b16 %v680
    %v784 = vunpack.c.l.b16 %v681
    %v785 = vunpack.c.l.b16 %v682
    %v786 = vunpack.c.l.b16 %v683
    %v787 = vunpack.c.l.b16 %v684
    %v788 = vunpack.c.l.b16 %v685
    %v789 = vunpack.c.l.b16 %v686
    %v790 = vunpack.c.l.b16 %v687
    %v791 = vunpack.c.l.b16 %v688
    %v792 = vunpack.c.l.b16 %v689
    %v793 = vunpack.c.l.b16 %v690
    %v794 = vunpack.c.l.b16 %v691
    %v795 = vunpack.c.l.b16 %v692
    %v796 = vunpack.c.l.b16 %v693
    %v797 = vunpack.c.l.b16 %v694
    %v798 = vunpack.c.l.b16 %v695
    %v799 = vpack.c.b16 %v752, %v751
    %v800 = vpack.c.b16 %v754, %v753
    %v801 = vpack.c.b16 %v756, %v755
    %v802 = vpack.c.b16 %v758, %v757
    %v803 = vpack.c.b16 %v760, %v759
    %v804 = vpack.c.b16 %v762, %v761
    %v805 = vpack.c.b16 %v764, %v763
    %v806 = vpack.c.b16 %v766, %v765
    %v807 = vpack.c.b16 %v768, %v767
    %v808 = vpack.c.b16 %v770, %v769
    %v809 = vpack.c.b16 %v772, %v771
    %v810 = vpack.c.b16 %v774, %v773
    %v811 = vpack.c.b16 %v776, %v775
    %v812 = vpack.c.b16 %v778, %v777
    %v813 = vpack.c.b16 %v780, %v779
    %v814 = vpack.c.b16 %v782, %v781
    %v815 = vpack.c.b16 %v784, %v783
    %v816 = vpack.c.b16 %v786, %v785
    %v817 = vpack.c.b16 %v788, %v787
    %v818 = vpack.c.b16 %v790, %v789
    %v819 = vpack.c.b16 %v792, %v791
    %v820 = vpack.c.b16 %v794, %v793
    %v821 = vpack.c.b16 %v796, %v795
    %v822 = vpack.c.b16 %v798, %v797
    %847 = vmatprep.subr.bf16.mxu0 0
    %848 = vmatpush1.bf16.msra.mxu0 %v806
    %849 = vmatprep.subr.bf16.mxu0 0
    %850 = vmatpush1.bf16.msra.mxu0 %v805
    %851 = vmatprep.subr.bf16.mxu0 0
    %852 = vmatpush1.bf16.msra.mxu0 %v804
    %853 = vmatprep.subr.bf16.mxu0 0
    %854 = vmatpush1.bf16.msra.mxu0 %v803
    %855 = vmatprep.subr.bf16.mxu0 0
    %856 = vmatpush1.bf16.msra.mxu0 %v802
    %857 = vmatprep.subr.bf16.mxu0 0
    %858 = vmatpush1.bf16.msra.mxu0 %v801
    %859 = vmatprep.subr.bf16.mxu0 0
    %860 = vmatpush1.bf16.msra.mxu0 %v800
    %861 = vmatprep.subr.bf16.mxu0 0
    %862 = vmatpush1.bf16.msra.mxu0 %v799
    %863 = vmatprep.subr.bf16.mxu0 0
    %864 = vmatpush2.bf16.msra.mxu0 %v814
    %865 = vmatprep.subr.bf16.mxu0 0
    %866 = vmatpush2.bf16.msra.mxu0 %v813
    %867 = vmatprep.subr.bf16.mxu0 0
    %868 = vmatpush2.bf16.msra.mxu0 %v812
    %869 = vmatprep.subr.bf16.mxu0 0
    %870 = vmatpush2.bf16.msra.mxu0 %v811
    %871 = vmatprep.subr.bf16.mxu0 0
    %872 = vmatpush2.bf16.msra.mxu0 %v810
    %873 = vmatprep.subr.bf16.mxu0 0
    %874 = vmatpush2.bf16.msra.mxu0 %v809
    %875 = vmatprep.subr.bf16.mxu0 0
    %876 = vmatpush2.bf16.msra.mxu0 %v808
    %877 = vmatprep.subr.bf16.mxu0 0
    %878 = vmatpush2.bf16.msra.mxu0 %v807
    %879 = vmatprep.mubr.bf16.mxu0 %v646
    %880 = vmatmul.mubr.bf16.gmra.mxu0 %v645
    %v881 = vpop.f32.mrf.mxu0
    %v882 = vadd.f32 %v701, %v881
    %v883 = vpop.f32.mrf.mxu0
    %v884 = vpop.f32.mrf.mxu0
    %v885 = vpop.f32.mrf.mxu0
    %886 = vdwg.mxu0
    %887 = vmatprep.subr.bf16.mxu0 0
    %888 = vmatpush1.bf16.msra.mxu0 %v822
    %889 = vmatprep.subr.bf16.mxu0 0
    %890 = vmatpush1.bf16.msra.mxu0 %v821
    %891 = vmatprep.subr.bf16.mxu0 0
    %892 = vmatpush1.bf16.msra.mxu0 %v820
    %893 = vmatprep.subr.bf16.mxu0 0
    %894 = vmatpush1.bf16.msra.mxu0 %v819
    %895 = vmatprep.subr.bf16.mxu0 0
    %896 = vmatpush1.bf16.msra.mxu0 %v818
    %897 = vmatprep.subr.bf16.mxu0 0
    %898 = vmatpush1.bf16.msra.mxu0 %v817
    %899 = vmatprep.subr.bf16.mxu0 0
    %900 = vmatpush1.bf16.msra.mxu0 %v816
    %901 = vmatprep.subr.bf16.mxu0 0
    %902 = vmatpush1.bf16.msra.mxu0 %v815
    %903 = vmatprep.subr.bf16.mxu0 0
    %904 = vmatpush2.bf16.msra.mxu0 0
    %905 = vmatprep.subr.bf16.mxu0 0
    %906 = vmatpush2.bf16.msra.mxu0 0
    %907 = vmatprep.subr.bf16.mxu0 0
    %908 = vmatpush2.bf16.msra.mxu0 0
    %909 = vmatprep.subr.bf16.mxu0 0
    %910 = vmatpush2.bf16.msra.mxu0 0
    %911 = vmatprep.subr.bf16.mxu0 0
    %912 = vmatpush2.bf16.msra.mxu0 0
    %913 = vmatprep.subr.bf16.mxu0 0
    %914 = vmatpush2.bf16.msra.mxu0 0
    %915 = vmatprep.subr.bf16.mxu0 0
    %916 = vmatpush2.bf16.msra.mxu0 0
    %917 = vmatprep.subr.bf16.mxu0 0
    %918 = vmatpush2.bf16.msra.mxu0 0
    %919 = vmatprep.mubr.bf16.mxu0 0
    %920 = vmatmul.mubr.bf16.gmra.mxu0 %v647
    %v921 = vpop.f32.mrf.mxu0
    %v922 = vadd.f32 %v882, %v921
    %v923 = vpop.f32.mrf.mxu0
    %v924 = vpop.f32.mrf.mxu0
    %v925 = vpop.f32.mrf.mxu0
    %926 = vdwg.mxu0
    %927 = vst [vmem:[#allocation2] sm:$0xff] %v922
    // Predicated region
    $region22: #{fourier_kan_forward.1} parent=1 // pred_check
      _
    $region23: #{fourier_kan_forward.1} parent=1 // pred_check_branch
      %929 = sbr.rel (0) target = $region25
    $region24: #{fourier_kan_forward.1} parent=1 // pred_region
      %s931 = ssub.s32 128, 128
      %932 = vsyncadd [#allocation3], %s931
      %s934 = sshll.u32 [#allocation2], 4
      %s935 = int_to_ptr.vmem [resolvable:$true] %s934
      %937 = dma.vmem_to_hbm [thread:$0]  %s935, 128, %s5, [#allocation3]
    $region25: #{fourier_kan_forward.1} parent=1 // pred_fallthru
      _
    // Predicated region
    $region26: #{fourier_kan_forward.1} parent=1 // pred_check
      _
    $region27: #{fourier_kan_forward.1} parent=1 // pred_check_branch
      %939 = sbr.rel (0) target = $region29
    $region28: #{fourier_kan_forward.1} parent=1 // pred_region
      %940 = dma.done [#allocation3], 128
    $region29: #{fourier_kan_forward.1} parent=1 // pred_fallthru
      _
    %941 = vsyncpa [#allocation3], 1

</llo_original>
